<compile_context>
chip_gen: v7x
topology: tpu7x:2x2x1
jax: 0.10.0
libtpu: 0.0.40
codegen_flags: <defaults>
</compile_context>

<pallas_src>
import bisect
import itertools

import jax
import jax.numpy as jnp
from jax.experimental import pallas as pl
from jax.experimental.pallas import tpu as pltpu

_EPS = 1e-8  # torch.nn.CosineSimilarity default eps (clamped per-norm, as in
             # current torch.nn.functional.cosine_similarity)


# ---------------------------------------------------------------------------
# Kernel
# ---------------------------------------------------------------------------
def _make_cd_kernel(n_tensors, eps):
    """Kernel over grid (batch_tiles, d_tiles); refs = N inputs + 1 output."""

    def kernel(*refs):
        in_refs = refs[:n_tensors]
        out_ref = refs[n_tensors]            # [TB, N, N] f32, resident across k
        k = pl.program_id(1)

        @pl.when(k == 0)
        def _init():
            out_ref[...] = jnp.zeros_like(out_ref)

        # Assemble the [TB, N, TD] view in VMEM from the N refs (native dtype).
        xs = jnp.stack([r[...] for r in in_refs], axis=1)
        # Partial Gram for this D tile: MXU, f32 accumulation, no transpose.
        g = jnp.einsum("bid,bjd->bij", xs, xs,
                       preferred_element_type=jnp.float32)       # [TB, N, N]
        out_ref[...] += g

        @pl.when(k == pl.num_programs(1) - 1)
        def _finalize():
            acc = out_ref[...]                                   # raw Gram, f32
            n = acc.shape[-1]
            rows = jax.lax.broadcasted_iota(jnp.int32, (n, n), 0)
            cols = jax.lax.broadcasted_iota(jnp.int32, (n, n), 1)
            eye = (rows == cols).astype(jnp.float32)
            sq = jnp.sum(acc * eye, axis=-1)                     # diag -> [TB, N]
            norm = jnp.maximum(jnp.sqrt(sq), eps)                # per-norm clamp
            denom = norm[:, :, None] * norm[:, None, :]          # [TB, N, N]
            out_ref[...] = jnp.abs(acc) / denom                  # |cosine|

    return kernel


# ---------------------------------------------------------------------------
# Tiling / VMEM heuristics
# ---------------------------------------------------------------------------
def _batch_tile_candidates(B):
    cands = {B}
    cands.update(t for t in range(8, B, 8) if B % t == 0)
    return sorted(cands)


def _feature_tile_candidates(D):
    cands = {D}
    cands.update(t for t in range(128, D, 128) if D % t == 0)
    return sorted(cands)


def _choose_tiles(B, D, n_tensors, itemsize, budget_bytes):
    """Largest (TB, TD) whose N input tiles fit the per-buffer byte budget."""
    tbs = _batch_tile_candidates(B)
    tds = _feature_tile_candidates(D)
    best = None
    for tb in tbs:
        max_td = budget_bytes // max(n_tensors * tb * itemsize, 1)
        i = bisect.bisect_right(tds, max_td) - 1
        if i < 0:
            continue
        td = tds[i]
        key = (n_tensors * tb * td * itemsize, td, tb)
        if best is None or key > best[0]:
            best = (key, (tb, td))
    if best is None:                 # nothing fits; rely on the raised vmem limit
        return tbs[0], tds[0]
    return best[1]


def _vmem_limit_bytes():
    try:
        cap = int(pltpu.get_tpu_info().vmem_capacity_bytes)
    except Exception:
        cap = 64 * 1024 * 1024       # conservative default (v7x per-core VMEM)
    return min(cap * 3 // 4, 100 * 1024 * 1024)


# ---------------------------------------------------------------------------
# pallas_call wrapper
# ---------------------------------------------------------------------------
def _pairwise_abs_cossim(flats, eps, block_override=None):
    """flats: list of N [B, D] arrays (same shape & dtype) -> [B, N, N] f32."""
    n = len(flats)
    B, D = flats[0].shape
    itemsize = jnp.dtype(flats[0].dtype).itemsize

    vmem_limit = _vmem_limit_bytes()
    if block_override is not None:
        tb, td = block_override
    else:
        # ~1/5 of the limit per input-tile set: 2x double-buffered inputs +
        # the stacked in-kernel view + headroom for compiler temporaries.
        tb, td = _choose_tiles(B, D, n, itemsize, vmem_limit // 5)

    grid = (B // tb, D // td)
    in_specs = [pl.BlockSpec((tb, td), lambda b, k: (b, k)) for _ in range(n)]
    out_specs = pl.BlockSpec((tb, n, n), lambda b, k: (b, 0, 0))

    return pl.pallas_call(
        _make_cd_kernel(n, eps),
        out_shape=jax.ShapeDtypeStruct((B, n, n), jnp.float32),
        grid_spec=pltpu.PrefetchScalarGridSpec(
            num_scalar_prefetch=0,
            grid=grid,
            in_specs=in_specs,
            out_specs=out_specs,
        ),
        compiler_params=pltpu.CompilerParams(
            dimension_semantics=("parallel", "arbitrary"),
            vmem_limit_bytes=vmem_limit,
        ),
    )(*flats)


def class_distinctiveness_loss(sal_tensor_list, eps=_EPS, block_override=None):
    """JAX/Pallas equivalent of ClassDistinctivenessLoss.forward.

    sal_tensor_list: list of N arrays, each [B, ...] (e.g. NCHW saliency maps).
    Returns (total_loss, loss_list [P], distance_list [B, P]),
    P = C(N, 2), pairs ordered as itertools.combinations.
    """
    flats = [t.reshape(t.shape[0], -1) for t in sal_tensor_list]  # no f32 upcast
    n = len(flats)
    B, D = flats[0].shape
    for f in flats:
        assert f.shape == (B, D), "all tensors must flatten to the same [B, D]"
    common = jnp.result_type(*[f.dtype for f in flats])
    flats = [f if f.dtype == common else f.astype(common) for f in flats]

    cos_all = _pairwise_abs_cossim(flats, eps, block_override)    # [B, N, N] f32

    pairs = list(itertools.combinations(range(n), 2))
    distance_list = jnp.stack([cos_all[:, i, j] for (i, j) in pairs], axis=1)
    loss_list = jnp.mean(distance_list, axis=0)                   # [P]
    total_loss = jnp.mean(loss_list)
    return total_loss, loss_list, distance_list


# ---------------------------------------------------------------------------
# Pure-JAX reference (mirrors the PyTorch math) for sanity checks
# ---------------------------------------------------------------------------
def _reference(sal_tensor_list, eps=_EPS):
    flats = [jnp.asarray(t, jnp.float32).reshape(t.shape[0], -1)
             for t in sal_tensor_list]
    cols, means = [], []
    for a, b in itertools.combinations(flats, 2):
        num = jnp.sum(a * b, axis=1)
        den = (jnp.maximum(jnp.linalg.norm(a, axis=1), eps)
               * jnp.maximum(jnp.linalg.norm(b, axis=1), eps))
        cs = jnp.abs(num / den)
        cols.append(cs)
        means.append(jnp.mean(cs))
    loss_list = jnp.stack(means)
    distance_list = jnp.stack(cols, axis=1)
    return jnp.mean(loss_list), loss_list, distance_list


if __name__ == "__main__":
    keys = jax.random.split(jax.random.PRNGKey(0), 8)

    # 1) f32 saliency maps (single-step grid).
    B, C, H, W = 2, 4, 16, 16
    sal_f32 = [jax.random.normal(keys[i], (B, C, H, W), dtype=jnp.float32)
               for i in range(3)]
    total, loss_list, distance_list = class_distinctiveness_loss(sal_f32)
    jax.block_until_ready((total, loss_list, distance_list))
    r_total, r_loss, r_dist = _reference(sal_f32)
    assert jnp.allclose(total, r_total, atol=1e-5), (total, r_total)
    assert jnp.allclose(loss_list, r_loss, atol=1e-5)
    assert jnp.allclose(distance_list, r_dist, atol=1e-5)

    # 2) bf16 saliency maps: native-dtype DMA + bf16 MXU with f32 accumulation.
    sal_bf16 = [t.astype(jnp.bfloat16) for t in sal_f32]
    t2, l2, d2 = class_distinctiveness_loss(sal_bf16)
    jax.block_until_ready((t2, l2, d2))
    r2_total, r2_loss, r2_dist = _reference(sal_bf16)
    assert jnp.allclose(t2, r2_total, atol=5e-3)
    assert jnp.allclose(l2, r2_loss, atol=5e-3)
    assert jnp.allclose(d2, r2_dist, atol=5e-3)

    # 3) multi-tile grid: exercises batch tiling + the D-reduction accumulator.
    B2, C2, H2, W2 = 16, 4, 8, 8          # D = 256
    sal_big = [jax.random.normal(keys[3 + i], (B2, C2, H2, W2), dtype=jnp.float32)
               for i in range(4)]
    t3, l3, d3 = class_distinctiveness_loss(sal_big, block_override=(8, 128))
    jax.block_until_ready((t3, l3, d3))
    r3_total, r3_loss, r3_dist = _reference(sal_big)
    assert jnp.allclose(t3, r3_total, atol=1e-5)
    assert jnp.allclose(l3, r3_loss, atol=1e-5)
    assert jnp.allclose(d3, r3_dist, atol=1e-5)

    print("KERNEL_OK")
</pallas_src>

<mosaic_0001>
module attributes {stable_mosaic.version = 11 : i64} {
  func.func @kernel(%arg0: i32, %arg1: i32, %arg2: memref<2x1024xf32, #tpu.memory_space<vmem>>, %arg3: memref<2x1024xf32, #tpu.memory_space<vmem>>, %arg4: memref<2x1024xf32, #tpu.memory_space<vmem>>, %arg5: memref<2x3x3xf32, #tpu.memory_space<vmem>>) attributes {dimension_semantics = [#tpu.dimension_semantics<parallel>, #tpu.dimension_semantics<arbitrary>], iteration_bounds = array<i64: 1, 1>, scalar_prefetch = 0 : i64, scratch_operands = 0 : i64, tpu.core_type = #tpu.core_type<tc>, window_params = [{transform_indices = @transform_0, window_bounds = array<i64: 2, 1024>}, {transform_indices = @transform_1, window_bounds = array<i64: 2, 1024>}, {transform_indices = @transform_2, window_bounds = array<i64: 2, 1024>}, {transform_indices = @transform_3, window_bounds = array<i64: 2, 3, 3>}]} {
    %c0_i32 = arith.constant 0 : i32
    %0 = arith.cmpi eq, %arg1, %c0_i32 : i32
    %1 = arith.extui %0 : i1 to i32
    %c0_i32_0 = arith.constant 0 : i32
    %2 = arith.cmpi ne, %1, %c0_i32_0 : i32
    scf.if %2 {
      %cst_14 = arith.constant 0.000000e+00 : f32
      %17 = vector.broadcast %cst_14 : f32 to vector<2x3x3xf32>
      %c0_15 = arith.constant 0 : index
      %c0_16 = arith.constant 0 : index
      %c0_17 = arith.constant 0 : index
      %18 = vector.load %arg5[%c0_15, %c0_16, %c0_17] : memref<2x3x3xf32, #tpu.memory_space<vmem>>, vector<2x3x3xf32>
      tpu.vector_store %arg5[%c0_15, %c0_16, %c0_17], %17 {strides = array<i32>} : memref<2x3x3xf32, #tpu.memory_space<vmem>>, vector<2x3x3xf32>,
    } else {
    }
    %c0 = arith.constant 0 : index
    %c0_1 = arith.constant 0 : index
    %3 = vector.load %arg2[%c0, %c0_1] : memref<2x1024xf32, #tpu.memory_space<vmem>>, vector<2x1024xf32>
    %c0_2 = arith.constant 0 : index
    %c0_3 = arith.constant 0 : index
    %4 = vector.load %arg3[%c0_2, %c0_3] : memref<2x1024xf32, #tpu.memory_space<vmem>>, vector<2x1024xf32>
    %c0_4 = arith.constant 0 : index
    %c0_5 = arith.constant 0 : index
    %5 = vector.load %arg4[%c0_4, %c0_5] : memref<2x1024xf32, #tpu.memory_space<vmem>>, vector<2x1024xf32>
    %6 = vector.shape_cast %3 : vector<2x1024xf32> to vector<2x1x1024xf32>
    %7 = vector.shape_cast %4 : vector<2x1024xf32> to vector<2x1x1024xf32>
    %8 = vector.shape_cast %5 : vector<2x1024xf32> to vector<2x1x1024xf32>
    %9 = tpu.concatenate %6, %7, %8 in 1 : vector<2x1x1024xf32>, vector<2x1x1024xf32>, vector<2x1x1024xf32> -> vector<2x3x1024xf32>
    "tpu.trace_start"() <{level = 10 : i32, message = "bid,bjd->bij"}> : () -> ()
    %cst = arith.constant dense<0.000000e+00> : vector<2x3x3xf32>
    %10 = tpu.matmul %9, %9, %cst {dimension_numbers = #tpu.dot_dimension_numbers<[2], [2], [1], [1], [0, 0, 0, 1, 1, 1], [0], [0]>} : vector<2x3x1024xf32>, vector<2x3x1024xf32>, vector<2x3x3xf32> -> vector<2x3x3xf32>
    "tpu.trace_stop"() : () -> ()
    %c0_6 = arith.constant 0 : index
    %c0_7 = arith.constant 0 : index
    %c0_8 = arith.constant 0 : index
    %11 = vector.load %arg5[%c0_6, %c0_7, %c0_8] : memref<2x3x3xf32, #tpu.memory_space<vmem>>, vector<2x3x3xf32>
    %12 = arith.addf %11, %10 : vector<2x3x3xf32>
    %c0_9 = arith.constant 0 : index
    %c0_10 = arith.constant 0 : index
    %c0_11 = arith.constant 0 : index
    %13 = vector.load %arg5[%c0_9, %c0_10, %c0_11] : memref<2x3x3xf32, #tpu.memory_space<vmem>>, vector<2x3x3xf32>
    tpu.vector_store %arg5[%c0_9, %c0_10, %c0_11], %12 {strides = array<i32>} : memref<2x3x3xf32, #tpu.memory_space<vmem>>, vector<2x3x3xf32>,
    %c0_i32_12 = arith.constant 0 : i32
    %14 = arith.cmpi eq, %arg1, %c0_i32_12 : i32
    %15 = arith.extui %14 : i1 to i32
    %c0_i32_13 = arith.constant 0 : i32
    %16 = arith.cmpi ne, %15, %c0_i32_13 : i32
    scf.if %16 {
      %c0_14 = arith.constant 0 : index
      %c0_15 = arith.constant 0 : index
      %c0_16 = arith.constant 0 : index
      %17 = vector.load %arg5[%c0_14, %c0_15, %c0_16] : memref<2x3x3xf32, #tpu.memory_space<vmem>>, vector<2x3x3xf32>
      %18 = tpu.iota {dimensions = array<i32: 0>} : vector<3x3xi32>
      %19 = tpu.iota {dimensions = array<i32: 1>} : vector<3x3xi32>
      %20 = arith.cmpi eq, %18, %19 : vector<3x3xi32>
      %21 = arith.extui %20 : vector<3x3xi1> to vector<3x3xi32>
      %22 = arith.sitofp %21 : vector<3x3xi32> to vector<3x3xf32>
      %23 = vector.shape_cast %22 : vector<3x3xf32> to vector<1x3x3xf32>
      %24 = vector.broadcast %23 : vector<1x3x3xf32> to vector<2x3x3xf32>
      %25 = arith.mulf %17, %24 : vector<2x3x3xf32>
      %cst_17 = arith.constant dense<0.000000e+00> : vector<2x3xf32>
      %26 = vector.multi_reduction <add>, %25, %cst_17 [2] : vector<2x3x3xf32> to vector<2x3xf32>
      %27 = math.sqrt %26 : vector<2x3xf32>
      %cst_18 = arith.constant 9.99999993E-9 : f32
      %28 = vector.broadcast %cst_18 : f32 to vector<2x3xf32>
      %29 = arith.maximumf %27, %28 : vector<2x3xf32>
      %30 = vector.shape_cast %29 : vector<2x3xf32> to vector<2x3x1xf32>
      %31 = vector.shape_cast %29 : vector<2x3xf32> to vector<2x1x3xf32>
      %32 = vector.broadcast %30 : vector<2x3x1xf32> to vector<2x3x3xf32>
      %33 = vector.broadcast %31 : vector<2x1x3xf32> to vector<2x3x3xf32>
      %34 = arith.mulf %32, %33 : vector<2x3x3xf32>
      %35 = math.absf %17 : vector<2x3x3xf32>
      %36 = arith.divf %35, %34 : vector<2x3x3xf32>
      %c0_19 = arith.constant 0 : index
      %c0_20 = arith.constant 0 : index
      %c0_21 = arith.constant 0 : index
      %37 = vector.load %arg5[%c0_19, %c0_20, %c0_21] : memref<2x3x3xf32, #tpu.memory_space<vmem>>, vector<2x3x3xf32>
      tpu.vector_store %arg5[%c0_19, %c0_20, %c0_21], %36 {strides = array<i32>} : memref<2x3x3xf32, #tpu.memory_space<vmem>>, vector<2x3x3xf32>,
    } else {
    }
    return
  }
  func.func @transform_0(%arg0: i32, %arg1: i32) -> (i32, i32) {
    %c0_i32 = arith.constant 0 : i32
    return %arg0, %arg1 : i32, i32
  }
  func.func @transform_1(%arg0: i32, %arg1: i32) -> (i32, i32) {
    %c0_i32 = arith.constant 0 : i32
    return %arg0, %arg1 : i32, i32
  }
  func.func @transform_2(%arg0: i32, %arg1: i32) -> (i32, i32) {
    %c0_i32 = arith.constant 0 : i32
    return %arg0, %arg1 : i32, i32
  }
  func.func @transform_3(%arg0: i32, %arg1: i32) -> (i32, i32, i32) {
    %c0_i32 = arith.constant 0 : i32
    %c0_i32_0 = arith.constant 0 : i32
    %c0_i32_1 = arith.constant 0 : i32
    return %arg0, %c0_i32, %c0_i32_0 : i32, i32, i32
  }
}

</mosaic_0001>

<llo_original>
// kernel: tpu_custom_call.1
$region0: #{tpu_custom_call.1}
  #allocation0 [shape = 'u32[]', space=smem, size = 0x4, offset = 0x4, fixed_abs, tag = 'smem constant byte address 0x4 - core index']
  #allocation1 [shape = 'u32[144,128]{1,0:T(1,128)}', space=vmem, size = 0x12000, scoped, tag = 'internal scratch']
  %s0 = inlined_call_operand.hbm [shape: f32[2,1024], index: 0, kind: input, shape index: {}]
  %s1 = inlined_call_operand.hbm [shape: f32[2,1024], index: 1, kind: input, shape index: {}]
  %s2 = inlined_call_operand.hbm [shape: f32[2,1024], index: 2, kind: input, shape index: {}]
  %s3 = inlined_call_operand.vmem [shape: f32[2,3,3], index: 3, kind: output, shape index: {}]
  %s4 = sld [smem:[#allocation0]]
  $region42: #{tpu_custom_call.1} parent=0
    _
  %s6 = ssub.s32 1, %s4
  %s7 = scalar_select 0, %s6, %s4
  $region1: #{tpu_custom_call.1} parent=0
    #allocation2 [shape = 'u8[8192]{0}', space=vmem, size = 0x2000, scoped, tag = 'input window, operand 0, single buffered']
    #allocation3 [shape = 's32[1]{0}', space=sflag, size = 0x4, scoped, tag = 'scoped memory for tpu_custom_call.1']
    #allocation4 [shape = 'u8[8192]{0}', space=vmem, size = 0x2000, scoped, tag = 'input window, operand 1, single buffered']
    #allocation5 [shape = 's32[1]{0}', space=sflag, size = 0x4, scoped, tag = 'scoped memory for tpu_custom_call.1']
    #allocation6 [shape = 'u8[8192]{0}', space=vmem, size = 0x2000, scoped, tag = 'input window, operand 2, single buffered']
    %8 = vsyncpa [#allocation3], 0
    %9 = vsyncpa [#allocation5], 0
    // Predicated region
    $region2: #{tpu_custom_call.1} parent=1 // pred_check
      _
    $region3: #{tpu_custom_call.1} parent=1 // pred_check_branch
      %11 = sbr.rel (0) target = $region5
    $region4: #{tpu_custom_call.1} parent=1 // pred_region
      %s13 = ssub.s32 256, 256
      %14 = vsyncadd [#allocation3], %s13
      %s16 = sshll.u32 [#allocation2], 4
      %s17 = int_to_ptr.vmem [resolvable:$true] %s16
      %19 = dma.hbm_to_vmem [thread:$0]  %s0, 256, %s17, [#allocation3]
    $region5: #{tpu_custom_call.1} parent=1 // pred_fallthru
      _
    // Predicated region
    $region6: #{tpu_custom_call.1} parent=1 // pred_check
      _
    $region7: #{tpu_custom_call.1} parent=1 // pred_check_branch
      %21 = sbr.rel (0) target = $region9
    $region8: #{tpu_custom_call.1} parent=1 // pred_region
      %s23 = ssub.s32 256, 256
      %24 = vsyncadd [#allocation5], %s23
      %s26 = sshll.u32 [#allocation4], 4
      %s27 = int_to_ptr.vmem [resolvable:$true] %s26
      %29 = dma.hbm_to_vmem [thread:$0]  %s1, 256, %s27, [#allocation5]
    $region9: #{tpu_custom_call.1} parent=1 // pred_fallthru
      _
    // Predicated region
    $region10: #{tpu_custom_call.1} parent=1 // pred_check
      _
    $region11: #{tpu_custom_call.1} parent=1 // pred_check_branch
      %31 = sbr.rel (0) target = $region13
    $region12: #{tpu_custom_call.1} parent=1 // pred_region
      %s33 = ssub.s32 256, 256
      %34 = vsyncadd [#allocation5], %s33
      %s36 = sshll.u32 [#allocation6], 4
      %s37 = int_to_ptr.vmem [resolvable:$true] %s36
      %39 = dma.hbm_to_vmem [thread:$0]  %s2, 256, %s37, [#allocation5]
    $region13: #{tpu_custom_call.1} parent=1 // pred_fallthru
      _
    // Predicated region
    $region14: #{tpu_custom_call.1} parent=1 // pred_check
      _
    $region15: #{tpu_custom_call.1} parent=1 // pred_check_branch
      %41 = sbr.rel (0) target = $region17
    $region16: #{tpu_custom_call.1} parent=1 // pred_region
      %42 = dma.done [#allocation3], 256
    $region17: #{tpu_custom_call.1} parent=1 // pred_fallthru
      _
    // Predicated region
    $region18: #{tpu_custom_call.1} parent=1 // pred_check
      _
    $region19: #{tpu_custom_call.1} parent=1 // pred_check_branch
      %44 = sbr.rel (0) target = $region21
    $region20: #{tpu_custom_call.1} parent=1 // pred_region
      %45 = dma.done [#allocation5], 256
    $region21: #{tpu_custom_call.1} parent=1 // pred_fallthru
      _
    // Predicated region
    $region22: #{tpu_custom_call.1} parent=1 // pred_check
      _
    $region23: #{tpu_custom_call.1} parent=1 // pred_check_branch
      %47 = sbr.rel (0) target = $region25
    $region24: #{tpu_custom_call.1} parent=1 // pred_region
      %48 = dma.done [#allocation5], 256
    $region25: #{tpu_custom_call.1} parent=1 // pred_fallthru
      _
    %p49 = scmp.eq.s32.totalorder 0, 0
    // Predicated region
    $region26: #{tpu_custom_call.1} parent=1 // pred_check
      %p50 = pneg %p49
    $region27: #{tpu_custom_call.1} parent=1 // pred_check_branch
      %52 = sbr.rel (%p50) target = $region29
    $region28: #{tpu_custom_call.1} parent=1 // pred_region
      %vm53 = vcmask 18432
      %54 = vst.msk [vmem:[%s3] sm:$0x7] %vm53, 0.0
      %55 = vst.msk [vmem:[%s3 + $0x4] sm:$0x7] %vm53, 0.0
    $region29: #{tpu_custom_call.1} parent=1 // pred_fallthru
      _
    %v56 = vld [vmem:[#allocation2] sm:$0xff]
    %v57 = vld [vmem:[#allocation2 + $0x8] sm:$0xff]
    %v58 = vld [vmem:[#allocation4] sm:$0xff]
    %v59 = vld [vmem:[#allocation4 + $0x8] sm:$0xff]
    %v60 = vld [vmem:[#allocation6] sm:$0xff]
    %v61 = vld [vmem:[#allocation6 + $0x8] sm:$0xff]
    %v65 = vunpack.c.l.s4 1966171168
    %v66 = vunpack.c.0.s8 %v65
    %v67 = vlaneseq
    %v68 = vshrl.u32 %v67, 7
    %v69 = vsub.s32 %v66, %v68
    %v70 = vrot.slane %v56, %v69
    %v72 = vunpack.c.l.s4 1966171168
    %v73 = vunpack.c.0.s8 %v72
    %v74 = vlaneseq
    %v75 = vshrl.u32 %v74, 7
    %v76 = vsub.s32 %v73, %v75
    %v77 = vrot.slane %v57, %v76
    %v78 = vcombine.low %v70, %v77
    %v79 = vcombine.high %v70, %v77
    %v83 = vunpack.c.l.s4 1966171168
    %v84 = vunpack.c.0.s8 %v83
    %v85 = vlaneseq
    %v86 = vshrl.u32 %v85, 7
    %v87 = vsub.s32 %v84, %v86
    %v88 = vrot.slane %v58, %v87
    %v90 = vunpack.c.l.s4 1966171168
    %v91 = vunpack.c.0.s8 %v90
    %v92 = vlaneseq
    %v93 = vshrl.u32 %v92, 7
    %v94 = vsub.s32 %v91, %v93
    %v95 = vrot.slane %v59, %v94
    %v96 = vcombine.low %v88, %v95
    %v97 = vcombine.high %v88, %v95
    %v101 = vunpack.c.l.s4 1966171168
    %v102 = vunpack.c.0.s8 %v101
    %v103 = vlaneseq
    %v104 = vshrl.u32 %v103, 7
    %v105 = vsub.s32 %v102, %v104
    %v106 = vrot.slane %v60, %v105
    %v108 = vunpack.c.l.s4 1966171168
    %v109 = vunpack.c.0.s8 %v108
    %v110 = vlaneseq
    %v111 = vshrl.u32 %v110, 7
    %v112 = vsub.s32 %v109, %v111
    %v113 = vrot.slane %v61, %v112
    %v114 = vcombine.low %v106, %v113
    %v115 = vcombine.high %v106, %v113
    %v116 = vlaneseq
    %v117 = vshrl.u32 %v116, 7
    %v118 = vsub.s32 0, %v117
    %v119 = vrot.slane %v78, %v118
    %v120 = vlaneseq
    %v121 = vshrl.u32 %v120, 7
    %v122 = vsub.s32 1, %v121
    %v123 = vrot.slane %v78, %v122
    %v124 = vlaneseq
    %v125 = vshrl.u32 %v124, 7
    %v126 = vsub.s32 2, %v125
    %v127 = vrot.slane %v78, %v126
    %v128 = vlaneseq
    %v129 = vshrl.u32 %v128, 7
    %v130 = vsub.s32 3, %v129
    %v131 = vrot.slane %v78, %v130
    %v132 = vlaneseq
    %v133 = vshrl.u32 %v132, 7
    %v134 = vsub.s32 4, %v133
    %v135 = vrot.slane %v78, %v134
    %v136 = vlaneseq
    %v137 = vshrl.u32 %v136, 7
    %v138 = vsub.s32 5, %v137
    %v139 = vrot.slane %v78, %v138
    %v140 = vlaneseq
    %v141 = vshrl.u32 %v140, 7
    %v142 = vsub.s32 6, %v141
    %v143 = vrot.slane %v78, %v142
    %v144 = vlaneseq
    %v145 = vshrl.u32 %v144, 7
    %v146 = vsub.s32 7, %v145
    %v147 = vrot.slane %v78, %v146
    %v148 = vlaneseq
    %v149 = vshrl.u32 %v148, 7
    %v150 = vsub.s32 0, %v149
    %v151 = vrot.slane %v79, %v150
    %v152 = vlaneseq
    %v153 = vshrl.u32 %v152, 7
    %v154 = vsub.s32 1, %v153
    %v155 = vrot.slane %v79, %v154
    %v156 = vlaneseq
    %v157 = vshrl.u32 %v156, 7
    %v158 = vsub.s32 2, %v157
    %v159 = vrot.slane %v79, %v158
    %v160 = vlaneseq
    %v161 = vshrl.u32 %v160, 7
    %v162 = vsub.s32 3, %v161
    %v163 = vrot.slane %v79, %v162
    %v164 = vlaneseq
    %v165 = vshrl.u32 %v164, 7
    %v166 = vsub.s32 4, %v165
    %v167 = vrot.slane %v79, %v166
    %v168 = vlaneseq
    %v169 = vshrl.u32 %v168, 7
    %v170 = vsub.s32 5, %v169
    %v171 = vrot.slane %v79, %v170
    %v172 = vlaneseq
    %v173 = vshrl.u32 %v172, 7
    %v174 = vsub.s32 6, %v173
    %v175 = vrot.slane %v79, %v174
    %v176 = vlaneseq
    %v177 = vshrl.u32 %v176, 7
    %v178 = vsub.s32 7, %v177
    %v179 = vrot.slane %v79, %v178
    %v196 = vlaneseq
    %v197 = vshrl.u32 %v196, 7
    %v198 = vsub.s32 0, %v197
    %v199 = vrot.slane %v96, %v198
    %v200 = vlaneseq
    %v201 = vshrl.u32 %v200, 7
    %v202 = vsub.s32 1, %v201
    %v203 = vrot.slane %v96, %v202
    %v204 = vlaneseq
    %v205 = vshrl.u32 %v204, 7
    %v206 = vsub.s32 2, %v205
    %v207 = vrot.slane %v96, %v206
    %v208 = vlaneseq
    %v209 = vshrl.u32 %v208, 7
    %v210 = vsub.s32 3, %v209
    %v211 = vrot.slane %v96, %v210
    %v212 = vlaneseq
    %v213 = vshrl.u32 %v212, 7
    %v214 = vsub.s32 4, %v213
    %v215 = vrot.slane %v96, %v214
    %v216 = vlaneseq
    %v217 = vshrl.u32 %v216, 7
    %v218 = vsub.s32 5, %v217
    %v219 = vrot.slane %v96, %v218
    %v220 = vlaneseq
    %v221 = vshrl.u32 %v220, 7
    %v222 = vsub.s32 6, %v221
    %v223 = vrot.slane %v96, %v222
    %v224 = vlaneseq
    %v225 = vshrl.u32 %v224, 7
    %v226 = vsub.s32 7, %v225
    %v227 = vrot.slane %v96, %v226
    %v228 = vlaneseq
    %v229 = vshrl.u32 %v228, 7
    %v230 = vsub.s32 0, %v229
    %v231 = vrot.slane %v97, %v230
    %v232 = vlaneseq
    %v233 = vshrl.u32 %v232, 7
    %v234 = vsub.s32 1, %v233
    %v235 = vrot.slane %v97, %v234
    %v236 = vlaneseq
    %v237 = vshrl.u32 %v236, 7
    %v238 = vsub.s32 2, %v237
    %v239 = vrot.slane %v97, %v238
    %v240 = vlaneseq
    %v241 = vshrl.u32 %v240, 7
    %v242 = vsub.s32 3, %v241
    %v243 = vrot.slane %v97, %v242
    %v244 = vlaneseq
    %v245 = vshrl.u32 %v244, 7
    %v246 = vsub.s32 4, %v245
    %v247 = vrot.slane %v97, %v246
    %v248 = vlaneseq
    %v249 = vshrl.u32 %v248, 7
    %v250 = vsub.s32 5, %v249
    %v251 = vrot.slane %v97, %v250
    %v252 = vlaneseq
    %v253 = vshrl.u32 %v252, 7
    %v254 = vsub.s32 6, %v253
    %v255 = vrot.slane %v97, %v254
    %v256 = vlaneseq
    %v257 = vshrl.u32 %v256, 7
    %v258 = vsub.s32 7, %v257
    %v259 = vrot.slane %v97, %v258
    %v276 = vlaneseq
    %v277 = vshrl.u32 %v276, 7
    %v278 = vsub.s32 0, %v277
    %v279 = vrot.slane %v114, %v278
    %v280 = vlaneseq
    %v281 = vshrl.u32 %v280, 7
    %v282 = vsub.s32 1, %v281
    %v283 = vrot.slane %v114, %v282
    %v284 = vlaneseq
    %v285 = vshrl.u32 %v284, 7
    %v286 = vsub.s32 2, %v285
    %v287 = vrot.slane %v114, %v286
    %v288 = vlaneseq
    %v289 = vshrl.u32 %v288, 7
    %v290 = vsub.s32 3, %v289
    %v291 = vrot.slane %v114, %v290
    %v292 = vlaneseq
    %v293 = vshrl.u32 %v292, 7
    %v294 = vsub.s32 4, %v293
    %v295 = vrot.slane %v114, %v294
    %v296 = vlaneseq
    %v297 = vshrl.u32 %v296, 7
    %v298 = vsub.s32 5, %v297
    %v299 = vrot.slane %v114, %v298
    %v300 = vlaneseq
    %v301 = vshrl.u32 %v300, 7
    %v302 = vsub.s32 6, %v301
    %v303 = vrot.slane %v114, %v302
    %v304 = vlaneseq
    %v305 = vshrl.u32 %v304, 7
    %v306 = vsub.s32 7, %v305
    %v307 = vrot.slane %v114, %v306
    %v308 = vlaneseq
    %v309 = vshrl.u32 %v308, 7
    %v310 = vsub.s32 0, %v309
    %v311 = vrot.slane %v115, %v310
    %v312 = vlaneseq
    %v313 = vshrl.u32 %v312, 7
    %v314 = vsub.s32 1, %v313
    %v315 = vrot.slane %v115, %v314
    %v316 = vlaneseq
    %v317 = vshrl.u32 %v316, 7
    %v318 = vsub.s32 2, %v317
    %v319 = vrot.slane %v115, %v318
    %v320 = vlaneseq
    %v321 = vshrl.u32 %v320, 7
    %v322 = vsub.s32 3, %v321
    %v323 = vrot.slane %v115, %v322
    %v324 = vlaneseq
    %v325 = vshrl.u32 %v324, 7
    %v326 = vsub.s32 4, %v325
    %v327 = vrot.slane %v115, %v326
    %v328 = vlaneseq
    %v329 = vshrl.u32 %v328, 7
    %v330 = vsub.s32 5, %v329
    %v331 = vrot.slane %v115, %v330
    %v332 = vlaneseq
    %v333 = vshrl.u32 %v332, 7
    %v334 = vsub.s32 6, %v333
    %v335 = vrot.slane %v115, %v334
    %v336 = vlaneseq
    %v337 = vshrl.u32 %v336, 7
    %v338 = vsub.s32 7, %v337
    %v339 = vrot.slane %v115, %v338
    %vm356 = vcmask 1040384
    %v357 = vsel %vm356, %v119, %v199
    %v358 = vsel %vm356, %v123, %v203
    %v359 = vsel %vm356, %v127, %v207
    %v360 = vsel %vm356, %v131, %v211
    %v361 = vsel %vm356, %v135, %v215
    %v362 = vsel %vm356, %v139, %v219
    %v363 = vsel %vm356, %v143, %v223
    %v364 = vsel %vm356, %v147, %v227
    %v365 = vsel %vm356, %v151, %v231
    %v366 = vsel %vm356, %v155, %v235
    %v367 = vsel %vm356, %v159, %v239
    %v368 = vsel %vm356, %v163, %v243
    %v369 = vsel %vm356, %v167, %v247
    %v370 = vsel %vm356, %v171, %v251
    %v371 = vsel %vm356, %v175, %v255
    %v372 = vsel %vm356, %v179, %v259
    %vm373 = vcmask 1041408
    %v374 = vsel %vm373, %v357, %v279
    %v375 = vsel %vm373, %v358, %v283
    %v376 = vsel %vm373, %v359, %v287
    %v377 = vsel %vm373, %v360, %v291
    %v378 = vsel %vm373, %v361, %v295
    %v379 = vsel %vm373, %v362, %v299
    %v380 = vsel %vm373, %v363, %v303
    %v381 = vsel %vm373, %v364, %v307
    %v382 = vsel %vm373, %v365, %v311
    %v383 = vsel %vm373, %v366, %v315
    %v384 = vsel %vm373, %v367, %v319
    %v385 = vsel %vm373, %v368, %v323
    %v386 = vsel %vm373, %v369, %v327
    %v387 = vsel %vm373, %v370, %v331
    %v388 = vsel %vm373, %v371, %v335
    %v389 = vsel %vm373, %v372, %v339
    %390 = vmatprep.subr.mxu0 %v375
    %391 = vmatpush1.xpose.msra.mxu0 %v374
    %392 = vmatprep.subr.mxu0 0.0
    %393 = vmatpush1.xpose.msra.mxu0 0.0
    %394 = vmatprep.subr.mxu0 0.0
    %395 = vmatpush1.xpose.msra.mxu0 0.0
    %396 = vmatprep.subr.mxu0 0.0
    %397 = vmatpush1.xpose.msra.mxu0 0.0
    %398 = vmatprep.subr.mxu0 0.0
    %399 = vmatpush1.xpose.msra.mxu0 0.0
    %400 = vmatprep.subr.mxu0 0.0
    %401 = vmatpush1.xpose.msra.mxu0 0.0
    %402 = vmatprep.subr.mxu0 0.0
    %403 = vmatpush1.xpose.msra.mxu0 0.0
    %404 = vmatprep.subr.mxu0 0.0
    %405 = vmatpush1.xpose.msra.mxu0 0.0
    %406 = vmatprep.subr.mxu0 0.0
    %407 = vmatpush1.xpose.msra.mxu0 0.0
    %408 = vmatprep.subr.mxu0 0.0
    %409 = vmatpush1.xpose.msra.mxu0 0.0
    %410 = vmatprep.subr.mxu0 0.0
    %411 = vmatpush1.xpose.msra.mxu0 0.0
    %412 = vmatprep.subr.mxu0 0.0
    %413 = vmatpush1.xpose.msra.mxu0 0.0
    %414 = vmatprep.subr.mxu0 0.0
    %415 = vmatpush1.xpose.msra.mxu0 0.0
    %416 = vmatprep.subr.mxu0 0.0
    %417 = vmatpush1.xpose.msra.mxu0 0.0
    %418 = vmatprep.subr.mxu0 0.0
    %419 = vmatpush1.xpose.msra.mxu0 0.0
    %420 = vmatprep.subr.mxu0 0.0
    %421 = vmatpush1.xpose.msra.mxu0 0.0
    %422 = vmatprep.subr.mxu0 0.0
    %423 = vmatpush1.xpose.msra.mxu0 0.0
    %424 = vmatprep.subr.mxu0 0.0
    %425 = vmatpush1.xpose.msra.mxu0 0.0
    %426 = vmatprep.subr.mxu0 0.0
    %427 = vmatpush1.xpose.msra.mxu0 0.0
    %428 = vmatprep.subr.mxu0 0.0
    %429 = vmatpush1.xpose.msra.mxu0 0.0
    %430 = vmatprep.subr.mxu0 0.0
    %431 = vmatpush1.xpose.msra.mxu0 0.0
    %432 = vmatprep.subr.mxu0 0.0
    %433 = vmatpush1.xpose.msra.mxu0 0.0
    %434 = vmatprep.subr.mxu0 0.0
    %435 = vmatpush1.xpose.msra.mxu0 0.0
    %436 = vmatprep.subr.mxu0 0.0
    %437 = vmatpush1.xpose.msra.mxu0 0.0
    %438 = vmatprep.subr.mxu0 0.0
    %439 = vmatpush1.xpose.msra.mxu0 0.0
    %440 = vmatprep.subr.mxu0 0.0
    %441 = vmatpush1.xpose.msra.mxu0 0.0
    %442 = vmatprep.subr.mxu0 0.0
    %443 = vmatpush1.xpose.msra.mxu0 0.0
    %444 = vmatprep.subr.mxu0 0.0
    %445 = vmatpush1.xpose.msra.mxu0 0.0
    %446 = vmatprep.subr.mxu0 0.0
    %447 = vmatpush1.xpose.msra.mxu0 0.0
    %448 = vmatprep.subr.mxu0 0.0
    %449 = vmatpush1.xpose.msra.mxu0 0.0
    %450 = vmatprep.subr.mxu0 0.0
    %451 = vmatpush1.xpose.msra.mxu0 0.0
    %452 = vmatprep.subr.mxu0 0.0
    %453 = vmatpush1.xpose.msra.mxu0 0.0
    %454 = vmatprep.mubr.f32.mxu0 %v375
    %455 = vmatmul.mubr.f32.gmra.mrb[0].mxu0 %v374
    %v456 = vpop.f32.mrb[0].mxu0
    %v457 = vadd.f32 0.0, %v456
    %v458 = vpop.f32.mrb[0].mxu0
    %459 = vdwg.mxu0
    %460 = vmatprep.subr.mxu0 %v377
    %461 = vmatpush1.xpose.msra.mxu0 %v376
    %462 = vmatprep.subr.mxu0 0.0
    %463 = vmatpush1.xpose.msra.mxu0 0.0
    %464 = vmatprep.subr.mxu0 0.0
    %465 = vmatpush1.xpose.msra.mxu0 0.0
    %466 = vmatprep.subr.mxu0 0.0
    %467 = vmatpush1.xpose.msra.mxu0 0.0
    %468 = vmatprep.subr.mxu0 0.0
    %469 = vmatpush1.xpose.msra.mxu0 0.0
    %470 = vmatprep.subr.mxu0 0.0
    %471 = vmatpush1.xpose.msra.mxu0 0.0
    %472 = vmatprep.subr.mxu0 0.0
    %473 = vmatpush1.xpose.msra.mxu0 0.0
    %474 = vmatprep.subr.mxu0 0.0
    %475 = vmatpush1.xpose.msra.mxu0 0.0
    %476 = vmatprep.subr.mxu0 0.0
    %477 = vmatpush1.xpose.msra.mxu0 0.0
    %478 = vmatprep.subr.mxu0 0.0
    %479 = vmatpush1.xpose.msra.mxu0 0.0
    %480 = vmatprep.subr.mxu0 0.0
    %481 = vmatpush1.xpose.msra.mxu0 0.0
    %482 = vmatprep.subr.mxu0 0.0
    %483 = vmatpush1.xpose.msra.mxu0 0.0
    %484 = vmatprep.subr.mxu0 0.0
    %485 = vmatpush1.xpose.msra.mxu0 0.0
    %486 = vmatprep.subr.mxu0 0.0
    %487 = vmatpush1.xpose.msra.mxu0 0.0
    %488 = vmatprep.subr.mxu0 0.0
    %489 = vmatpush1.xpose.msra.mxu0 0.0
    %490 = vmatprep.subr.mxu0 0.0
    %491 = vmatpush1.xpose.msra.mxu0 0.0
    %492 = vmatprep.subr.mxu0 0.0
    %493 = vmatpush1.xpose.msra.mxu0 0.0
    %494 = vmatprep.subr.mxu0 0.0
    %495 = vmatpush1.xpose.msra.mxu0 0.0
    %496 = vmatprep.subr.mxu0 0.0
    %497 = vmatpush1.xpose.msra.mxu0 0.0
    %498 = vmatprep.subr.mxu0 0.0
    %499 = vmatpush1.xpose.msra.mxu0 0.0
    %500 = vmatprep.subr.mxu0 0.0
    %501 = vmatpush1.xpose.msra.mxu0 0.0
    %502 = vmatprep.subr.mxu0 0.0
    %503 = vmatpush1.xpose.msra.mxu0 0.0
    %504 = vmatprep.subr.mxu0 0.0
    %505 = vmatpush1.xpose.msra.mxu0 0.0
    %506 = vmatprep.subr.mxu0 0.0
    %507 = vmatpush1.xpose.msra.mxu0 0.0
    %508 = vmatprep.subr.mxu0 0.0
    %509 = vmatpush1.xpose.msra.mxu0 0.0
    %510 = vmatprep.subr.mxu0 0.0
    %511 = vmatpush1.xpose.msra.mxu0 0.0
    %512 = vmatprep.subr.mxu0 0.0
    %513 = vmatpush1.xpose.msra.mxu0 0.0
    %514 = vmatprep.subr.mxu0 0.0
    %515 = vmatpush1.xpose.msra.mxu0 0.0
    %516 = vmatprep.subr.mxu0 0.0
    %517 = vmatpush1.xpose.msra.mxu0 0.0
    %518 = vmatprep.subr.mxu0 0.0
    %519 = vmatpush1.xpose.msra.mxu0 0.0
    %520 = vmatprep.subr.mxu0 0.0
    %521 = vmatpush1.xpose.msra.mxu0 0.0
    %522 = vmatprep.subr.mxu0 0.0
    %523 = vmatpush1.xpose.msra.mxu0 0.0
    %524 = vmatprep.mubr.f32.mxu0 %v377
    %525 = vmatmul.mubr.f32.gmra.mrb[0].mxu0 %v376
    %v526 = vpop.f32.mrb[0].mxu0
    %v527 = vadd.f32 %v457, %v526
    %v528 = vpop.f32.mrb[0].mxu0
    %529 = vdwg.mxu0
    %530 = vmatprep.subr.mxu0 %v379
    %531 = vmatpush1.xpose.msra.mxu0 %v378
    %532 = vmatprep.subr.mxu0 0.0
    %533 = vmatpush1.xpose.msra.mxu0 0.0
    %534 = vmatprep.subr.mxu0 0.0
    %535 = vmatpush1.xpose.msra.mxu0 0.0
    %536 = vmatprep.subr.mxu0 0.0
    %537 = vmatpush1.xpose.msra.mxu0 0.0
    %538 = vmatprep.subr.mxu0 0.0
    %539 = vmatpush1.xpose.msra.mxu0 0.0
    %540 = vmatprep.subr.mxu0 0.0
    %541 = vmatpush1.xpose.msra.mxu0 0.0
    %542 = vmatprep.subr.mxu0 0.0
    %543 = vmatpush1.xpose.msra.mxu0 0.0
    %544 = vmatprep.subr.mxu0 0.0
    %545 = vmatpush1.xpose.msra.mxu0 0.0
    %546 = vmatprep.subr.mxu0 0.0
    %547 = vmatpush1.xpose.msra.mxu0 0.0
    %548 = vmatprep.subr.mxu0 0.0
    %549 = vmatpush1.xpose.msra.mxu0 0.0
    %550 = vmatprep.subr.mxu0 0.0
    %551 = vmatpush1.xpose.msra.mxu0 0.0
    %552 = vmatprep.subr.mxu0 0.0
    %553 = vmatpush1.xpose.msra.mxu0 0.0
    %554 = vmatprep.subr.mxu0 0.0
    %555 = vmatpush1.xpose.msra.mxu0 0.0
    %556 = vmatprep.subr.mxu0 0.0
    %557 = vmatpush1.xpose.msra.mxu0 0.0
    %558 = vmatprep.subr.mxu0 0.0
    %559 = vmatpush1.xpose.msra.mxu0 0.0
    %560 = vmatprep.subr.mxu0 0.0
    %561 = vmatpush1.xpose.msra.mxu0 0.0
    %562 = vmatprep.subr.mxu0 0.0
    %563 = vmatpush1.xpose.msra.mxu0 0.0
    %564 = vmatprep.subr.mxu0 0.0
    %565 = vmatpush1.xpose.msra.mxu0 0.0
    %566 = vmatprep.subr.mxu0 0.0
    %567 = vmatpush1.xpose.msra.mxu0 0.0
    %568 = vmatprep.subr.mxu0 0.0
    %569 = vmatpush1.xpose.msra.mxu0 0.0
    %570 = vmatprep.subr.mxu0 0.0
    %571 = vmatpush1.xpose.msra.mxu0 0.0
    %572 = vmatprep.subr.mxu0 0.0
    %573 = vmatpush1.xpose.msra.mxu0 0.0
    %574 = vmatprep.subr.mxu0 0.0
    %575 = vmatpush1.xpose.msra.mxu0 0.0
    %576 = vmatprep.subr.mxu0 0.0
    %577 = vmatpush1.xpose.msra.mxu0 0.0
    %578 = vmatprep.subr.mxu0 0.0
    %579 = vmatpush1.xpose.msra.mxu0 0.0
    %580 = vmatprep.subr.mxu0 0.0
    %581 = vmatpush1.xpose.msra.mxu0 0.0
    %582 = vmatprep.subr.mxu0 0.0
    %583 = vmatpush1.xpose.msra.mxu0 0.0
    %584 = vmatprep.subr.mxu0 0.0
    %585 = vmatpush1.xpose.msra.mxu0 0.0
    %586 = vmatprep.subr.mxu0 0.0
    %587 = vmatpush1.xpose.msra.mxu0 0.0
    %588 = vmatprep.subr.mxu0 0.0
    %589 = vmatpush1.xpose.msra.mxu0 0.0
    %590 = vmatprep.subr.mxu0 0.0
    %591 = vmatpush1.xpose.msra.mxu0 0.0
    %592 = vmatprep.subr.mxu0 0.0
    %593 = vmatpush1.xpose.msra.mxu0 0.0
    %594 = vmatprep.mubr.f32.mxu0 %v379
    %595 = vmatmul.mubr.f32.gmra.mrb[0].mxu0 %v378
    %v596 = vpop.f32.mrb[0].mxu0
    %v597 = vadd.f32 %v527, %v596
    %v598 = vpop.f32.mrb[0].mxu0
    %599 = vdwg.mxu0
    %600 = vmatprep.subr.mxu0 %v381
    %601 = vmatpush1.xpose.msra.mxu0 %v380
    %602 = vmatprep.subr.mxu0 0.0
    %603 = vmatpush1.xpose.msra.mxu0 0.0
    %604 = vmatprep.subr.mxu0 0.0
    %605 = vmatpush1.xpose.msra.mxu0 0.0
    %606 = vmatprep.subr.mxu0 0.0
    %607 = vmatpush1.xpose.msra.mxu0 0.0
    %608 = vmatprep.subr.mxu0 0.0
    %609 = vmatpush1.xpose.msra.mxu0 0.0
    %610 = vmatprep.subr.mxu0 0.0
    %611 = vmatpush1.xpose.msra.mxu0 0.0
    %612 = vmatprep.subr.mxu0 0.0
    %613 = vmatpush1.xpose.msra.mxu0 0.0
    %614 = vmatprep.subr.mxu0 0.0
    %615 = vmatpush1.xpose.msra.mxu0 0.0
    %616 = vmatprep.subr.mxu0 0.0
    %617 = vmatpush1.xpose.msra.mxu0 0.0
    %618 = vmatprep.subr.mxu0 0.0
    %619 = vmatpush1.xpose.msra.mxu0 0.0
    %620 = vmatprep.subr.mxu0 0.0
    %621 = vmatpush1.xpose.msra.mxu0 0.0
    %622 = vmatprep.subr.mxu0 0.0
    %623 = vmatpush1.xpose.msra.mxu0 0.0
    %624 = vmatprep.subr.mxu0 0.0
    %625 = vmatpush1.xpose.msra.mxu0 0.0
    %626 = vmatprep.subr.mxu0 0.0
    %627 = vmatpush1.xpose.msra.mxu0 0.0
    %628 = vmatprep.subr.mxu0 0.0
    %629 = vmatpush1.xpose.msra.mxu0 0.0
    %630 = vmatprep.subr.mxu0 0.0
    %631 = vmatpush1.xpose.msra.mxu0 0.0
    %632 = vmatprep.subr.mxu0 0.0
    %633 = vmatpush1.xpose.msra.mxu0 0.0
    %634 = vmatprep.subr.mxu0 0.0
    %635 = vmatpush1.xpose.msra.mxu0 0.0
    %636 = vmatprep.subr.mxu0 0.0
    %637 = vmatpush1.xpose.msra.mxu0 0.0
    %638 = vmatprep.subr.mxu0 0.0
    %639 = vmatpush1.xpose.msra.mxu0 0.0
    %640 = vmatprep.subr.mxu0 0.0
    %641 = vmatpush1.xpose.msra.mxu0 0.0
    %642 = vmatprep.subr.mxu0 0.0
    %643 = vmatpush1.xpose.msra.mxu0 0.0
    %644 = vmatprep.subr.mxu0 0.0
    %645 = vmatpush1.xpose.msra.mxu0 0.0
    %646 = vmatprep.subr.mxu0 0.0
    %647 = vmatpush1.xpose.msra.mxu0 0.0
    %648 = vmatprep.subr.mxu0 0.0
    %649 = vmatpush1.xpose.msra.mxu0 0.0
    %650 = vmatprep.subr.mxu0 0.0
    %651 = vmatpush1.xpose.msra.mxu0 0.0
    %652 = vmatprep.subr.mxu0 0.0
    %653 = vmatpush1.xpose.msra.mxu0 0.0
    %654 = vmatprep.subr.mxu0 0.0
    %655 = vmatpush1.xpose.msra.mxu0 0.0
    %656 = vmatprep.subr.mxu0 0.0
    %657 = vmatpush1.xpose.msra.mxu0 0.0
    %658 = vmatprep.subr.mxu0 0.0
    %659 = vmatpush1.xpose.msra.mxu0 0.0
    %660 = vmatprep.subr.mxu0 0.0
    %661 = vmatpush1.xpose.msra.mxu0 0.0
    %662 = vmatprep.subr.mxu0 0.0
    %663 = vmatpush1.xpose.msra.mxu0 0.0
    %664 = vmatprep.mubr.f32.mxu0 %v381
    %665 = vmatmul.mubr.f32.gmra.mrb[0].mxu0 %v380
    %v666 = vpop.f32.mrb[0].mxu0
    %v667 = vadd.f32 %v597, %v666
    %v668 = vpop.f32.mrb[0].mxu0
    %669 = vdwg.mxu0
    %670 = vmatprep.subr.mxu0 %v383
    %671 = vmatpush1.xpose.msra.mxu0 %v382
    %672 = vmatprep.subr.mxu0 0.0
    %673 = vmatpush1.xpose.msra.mxu0 0.0
    %674 = vmatprep.subr.mxu0 0.0
    %675 = vmatpush1.xpose.msra.mxu0 0.0
    %676 = vmatprep.subr.mxu0 0.0
    %677 = vmatpush1.xpose.msra.mxu0 0.0
    %678 = vmatprep.subr.mxu0 0.0
    %679 = vmatpush1.xpose.msra.mxu0 0.0
    %680 = vmatprep.subr.mxu0 0.0
    %681 = vmatpush1.xpose.msra.mxu0 0.0
    %682 = vmatprep.subr.mxu0 0.0
    %683 = vmatpush1.xpose.msra.mxu0 0.0
    %684 = vmatprep.subr.mxu0 0.0
    %685 = vmatpush1.xpose.msra.mxu0 0.0
    %686 = vmatprep.subr.mxu0 0.0
    %687 = vmatpush1.xpose.msra.mxu0 0.0
    %688 = vmatprep.subr.mxu0 0.0
    %689 = vmatpush1.xpose.msra.mxu0 0.0
    %690 = vmatprep.subr.mxu0 0.0
    %691 = vmatpush1.xpose.msra.mxu0 0.0
    %692 = vmatprep.subr.mxu0 0.0
    %693 = vmatpush1.xpose.msra.mxu0 0.0
    %694 = vmatprep.subr.mxu0 0.0
    %695 = vmatpush1.xpose.msra.mxu0 0.0
    %696 = vmatprep.subr.mxu0 0.0
    %697 = vmatpush1.xpose.msra.mxu0 0.0
    %698 = vmatprep.subr.mxu0 0.0
    %699 = vmatpush1.xpose.msra.mxu0 0.0
    %700 = vmatprep.subr.mxu0 0.0
    %701 = vmatpush1.xpose.msra.mxu0 0.0
    %702 = vmatprep.subr.mxu0 0.0
    %703 = vmatpush1.xpose.msra.mxu0 0.0
    %704 = vmatprep.subr.mxu0 0.0
    %705 = vmatpush1.xpose.msra.mxu0 0.0
    %706 = vmatprep.subr.mxu0 0.0
    %707 = vmatpush1.xpose.msra.mxu0 0.0
    %708 = vmatprep.subr.mxu0 0.0
    %709 = vmatpush1.xpose.msra.mxu0 0.0
    %710 = vmatprep.subr.mxu0 0.0
    %711 = vmatpush1.xpose.msra.mxu0 0.0
    %712 = vmatprep.subr.mxu0 0.0
    %713 = vmatpush1.xpose.msra.mxu0 0.0
    %714 = vmatprep.subr.mxu0 0.0
    %715 = vmatpush1.xpose.msra.mxu0 0.0
    %716 = vmatprep.subr.mxu0 0.0
    %717 = vmatpush1.xpose.msra.mxu0 0.0
    %718 = vmatprep.subr.mxu0 0.0
    %719 = vmatpush1.xpose.msra.mxu0 0.0
    %720 = vmatprep.subr.mxu0 0.0
    %721 = vmatpush1.xpose.msra.mxu0 0.0
    %722 = vmatprep.subr.mxu0 0.0
    %723 = vmatpush1.xpose.msra.mxu0 0.0
    %724 = vmatprep.subr.mxu0 0.0
    %725 = vmatpush1.xpose.msra.mxu0 0.0
    %726 = vmatprep.subr.mxu0 0.0
    %727 = vmatpush1.xpose.msra.mxu0 0.0
    %728 = vmatprep.subr.mxu0 0.0
    %729 = vmatpush1.xpose.msra.mxu0 0.0
    %730 = vmatprep.subr.mxu0 0.0
    %731 = vmatpush1.xpose.msra.mxu0 0.0
    %732 = vmatprep.subr.mxu0 0.0
    %733 = vmatpush1.xpose.msra.mxu0 0.0
    %734 = vmatprep.mubr.f32.mxu0 %v383
    %735 = vmatmul.mubr.f32.gmra.mrb[0].mxu0 %v382
    %v736 = vpop.f32.mrb[0].mxu0
    %v737 = vadd.f32 0.0, %v736
    %v738 = vpop.f32.mrb[0].mxu0
    %739 = vdwg.mxu0
    %740 = vmatprep.subr.mxu0 %v385
    %741 = vmatpush1.xpose.msra.mxu0 %v384
    %742 = vmatprep.subr.mxu0 0.0
    %743 = vmatpush1.xpose.msra.mxu0 0.0
    %744 = vmatprep.subr.mxu0 0.0
    %745 = vmatpush1.xpose.msra.mxu0 0.0
    %746 = vmatprep.subr.mxu0 0.0
    %747 = vmatpush1.xpose.msra.mxu0 0.0
    %748 = vmatprep.subr.mxu0 0.0
    %749 = vmatpush1.xpose.msra.mxu0 0.0
    %750 = vmatprep.subr.mxu0 0.0
    %751 = vmatpush1.xpose.msra.mxu0 0.0
    %752 = vmatprep.subr.mxu0 0.0
    %753 = vmatpush1.xpose.msra.mxu0 0.0
    %754 = vmatprep.subr.mxu0 0.0
    %755 = vmatpush1.xpose.msra.mxu0 0.0
    %756 = vmatprep.subr.mxu0 0.0
    %757 = vmatpush1.xpose.msra.mxu0 0.0
    %758 = vmatprep.subr.mxu0 0.0
    %759 = vmatpush1.xpose.msra.mxu0 0.0
    %760 = vmatprep.subr.mxu0 0.0
    %761 = vmatpush1.xpose.msra.mxu0 0.0
    %762 = vmatprep.subr.mxu0 0.0
    %763 = vmatpush1.xpose.msra.mxu0 0.0
    %764 = vmatprep.subr.mxu0 0.0
    %765 = vmatpush1.xpose.msra.mxu0 0.0
    %766 = vmatprep.subr.mxu0 0.0
    %767 = vmatpush1.xpose.msra.mxu0 0.0
    %768 = vmatprep.subr.mxu0 0.0
    %769 = vmatpush1.xpose.msra.mxu0 0.0
    %770 = vmatprep.subr.mxu0 0.0
    %771 = vmatpush1.xpose.msra.mxu0 0.0
    %772 = vmatprep.subr.mxu0 0.0
    %773 = vmatpush1.xpose.msra.mxu0 0.0
    %774 = vmatprep.subr.mxu0 0.0
    %775 = vmatpush1.xpose.msra.mxu0 0.0
    %776 = vmatprep.subr.mxu0 0.0
    %777 = vmatpush1.xpose.msra.mxu0 0.0
    %778 = vmatprep.subr.mxu0 0.0
    %779 = vmatpush1.xpose.msra.mxu0 0.0
    %780 = vmatprep.subr.mxu0 0.0
    %781 = vmatpush1.xpose.msra.mxu0 0.0
    %782 = vmatprep.subr.mxu0 0.0
    %783 = vmatpush1.xpose.msra.mxu0 0.0
    %784 = vmatprep.subr.mxu0 0.0
    %785 = vmatpush1.xpose.msra.mxu0 0.0
    %786 = vmatprep.subr.mxu0 0.0
    %787 = vmatpush1.xpose.msra.mxu0 0.0
    %788 = vmatprep.subr.mxu0 0.0
    %789 = vmatpush1.xpose.msra.mxu0 0.0
    %790 = vmatprep.subr.mxu0 0.0
    %791 = vmatpush1.xpose.msra.mxu0 0.0
    %792 = vmatprep.subr.mxu0 0.0
    %793 = vmatpush1.xpose.msra.mxu0 0.0
    %794 = vmatprep.subr.mxu0 0.0
    %795 = vmatpush1.xpose.msra.mxu0 0.0
    %796 = vmatprep.subr.mxu0 0.0
    %797 = vmatpush1.xpose.msra.mxu0 0.0
    %798 = vmatprep.subr.mxu0 0.0
    %799 = vmatpush1.xpose.msra.mxu0 0.0
    %800 = vmatprep.subr.mxu0 0.0
    %801 = vmatpush1.xpose.msra.mxu0 0.0
    %802 = vmatprep.subr.mxu0 0.0
    %803 = vmatpush1.xpose.msra.mxu0 0.0
    %804 = vmatprep.mubr.f32.mxu0 %v385
    %805 = vmatmul.mubr.f32.gmra.mrb[0].mxu0 %v384
    %v806 = vpop.f32.mrb[0].mxu0
    %v807 = vadd.f32 %v737, %v806
    %v808 = vpop.f32.mrb[0].mxu0
    %809 = vdwg.mxu0
    %810 = vmatprep.subr.mxu0 %v387
    %811 = vmatpush1.xpose.msra.mxu0 %v386
    %812 = vmatprep.subr.mxu0 0.0
    %813 = vmatpush1.xpose.msra.mxu0 0.0
    %814 = vmatprep.subr.mxu0 0.0
    %815 = vmatpush1.xpose.msra.mxu0 0.0
    %816 = vmatprep.subr.mxu0 0.0
    %817 = vmatpush1.xpose.msra.mxu0 0.0
    %818 = vmatprep.subr.mxu0 0.0
    %819 = vmatpush1.xpose.msra.mxu0 0.0
    %820 = vmatprep.subr.mxu0 0.0
    %821 = vmatpush1.xpose.msra.mxu0 0.0
    %822 = vmatprep.subr.mxu0 0.0
    %823 = vmatpush1.xpose.msra.mxu0 0.0
    %824 = vmatprep.subr.mxu0 0.0
    %825 = vmatpush1.xpose.msra.mxu0 0.0
    %826 = vmatprep.subr.mxu0 0.0
    %827 = vmatpush1.xpose.msra.mxu0 0.0
    %828 = vmatprep.subr.mxu0 0.0
    %829 = vmatpush1.xpose.msra.mxu0 0.0
    %830 = vmatprep.subr.mxu0 0.0
    %831 = vmatpush1.xpose.msra.mxu0 0.0
    %832 = vmatprep.subr.mxu0 0.0
    %833 = vmatpush1.xpose.msra.mxu0 0.0
    %834 = vmatprep.subr.mxu0 0.0
    %835 = vmatpush1.xpose.msra.mxu0 0.0
    %836 = vmatprep.subr.mxu0 0.0
    %837 = vmatpush1.xpose.msra.mxu0 0.0
    %838 = vmatprep.subr.mxu0 0.0
    %839 = vmatpush1.xpose.msra.mxu0 0.0
    %840 = vmatprep.subr.mxu0 0.0
    %841 = vmatpush1.xpose.msra.mxu0 0.0
    %842 = vmatprep.subr.mxu0 0.0
    %843 = vmatpush1.xpose.msra.mxu0 0.0
    %844 = vmatprep.subr.mxu0 0.0
    %845 = vmatpush1.xpose.msra.mxu0 0.0
    %846 = vmatprep.subr.mxu0 0.0
    %847 = vmatpush1.xpose.msra.mxu0 0.0
    %848 = vmatprep.subr.mxu0 0.0
    %849 = vmatpush1.xpose.msra.mxu0 0.0
    %850 = vmatprep.subr.mxu0 0.0
    %851 = vmatpush1.xpose.msra.mxu0 0.0
    %852 = vmatprep.subr.mxu0 0.0
    %853 = vmatpush1.xpose.msra.mxu0 0.0
    %854 = vmatprep.subr.mxu0 0.0
    %855 = vmatpush1.xpose.msra.mxu0 0.0
    %856 = vmatprep.subr.mxu0 0.0
    %857 = vmatpush1.xpose.msra.mxu0 0.0
    %858 = vmatprep.subr.mxu0 0.0
    %859 = vmatpush1.xpose.msra.mxu0 0.0
    %860 = vmatprep.subr.mxu0 0.0
    %861 = vmatpush1.xpose.msra.mxu0 0.0
    %862 = vmatprep.subr.mxu0 0.0
    %863 = vmatpush1.xpose.msra.mxu0 0.0
    %864 = vmatprep.subr.mxu0 0.0
    %865 = vmatpush1.xpose.msra.mxu0 0.0
    %866 = vmatprep.subr.mxu0 0.0
    %867 = vmatpush1.xpose.msra.mxu0 0.0
    %868 = vmatprep.subr.mxu0 0.0
    %869 = vmatpush1.xpose.msra.mxu0 0.0
    %870 = vmatprep.subr.mxu0 0.0
    %871 = vmatpush1.xpose.msra.mxu0 0.0
    %872 = vmatprep.subr.mxu0 0.0
    %873 = vmatpush1.xpose.msra.mxu0 0.0
    %874 = vmatprep.mubr.f32.mxu0 %v387
    %875 = vmatmul.mubr.f32.gmra.mrb[0].mxu0 %v386
    %v876 = vpop.f32.mrb[0].mxu0
    %v877 = vadd.f32 %v807, %v876
    %v878 = vpop.f32.mrb[0].mxu0
    %879 = vdwg.mxu0
    %880 = vmatprep.subr.mxu0 %v389
    %881 = vmatpush1.xpose.msra.mxu0 %v388
    %882 = vmatprep.subr.mxu0 0.0
    %883 = vmatpush1.xpose.msra.mxu0 0.0
    %884 = vmatprep.subr.mxu0 0.0
    %885 = vmatpush1.xpose.msra.mxu0 0.0
    %886 = vmatprep.subr.mxu0 0.0
    %887 = vmatpush1.xpose.msra.mxu0 0.0
    %888 = vmatprep.subr.mxu0 0.0
    %889 = vmatpush1.xpose.msra.mxu0 0.0
    %890 = vmatprep.subr.mxu0 0.0
    %891 = vmatpush1.xpose.msra.mxu0 0.0
    %892 = vmatprep.subr.mxu0 0.0
    %893 = vmatpush1.xpose.msra.mxu0 0.0
    %894 = vmatprep.subr.mxu0 0.0
    %895 = vmatpush1.xpose.msra.mxu0 0.0
    %896 = vmatprep.subr.mxu0 0.0
    %897 = vmatpush1.xpose.msra.mxu0 0.0
    %898 = vmatprep.subr.mxu0 0.0
    %899 = vmatpush1.xpose.msra.mxu0 0.0
    %900 = vmatprep.subr.mxu0 0.0
    %901 = vmatpush1.xpose.msra.mxu0 0.0
    %902 = vmatprep.subr.mxu0 0.0
    %903 = vmatpush1.xpose.msra.mxu0 0.0
    %904 = vmatprep.subr.mxu0 0.0
    %905 = vmatpush1.xpose.msra.mxu0 0.0
    %906 = vmatprep.subr.mxu0 0.0
    %907 = vmatpush1.xpose.msra.mxu0 0.0
    %908 = vmatprep.subr.mxu0 0.0
    %909 = vmatpush1.xpose.msra.mxu0 0.0
    %910 = vmatprep.subr.mxu0 0.0
    %911 = vmatpush1.xpose.msra.mxu0 0.0
    %912 = vmatprep.subr.mxu0 0.0
    %913 = vmatpush1.xpose.msra.mxu0 0.0
    %914 = vmatprep.subr.mxu0 0.0
    %915 = vmatpush1.xpose.msra.mxu0 0.0
    %916 = vmatprep.subr.mxu0 0.0
    %917 = vmatpush1.xpose.msra.mxu0 0.0
    %918 = vmatprep.subr.mxu0 0.0
    %919 = vmatpush1.xpose.msra.mxu0 0.0
    %920 = vmatprep.subr.mxu0 0.0
    %921 = vmatpush1.xpose.msra.mxu0 0.0
    %922 = vmatprep.subr.mxu0 0.0
    %923 = vmatpush1.xpose.msra.mxu0 0.0
    %924 = vmatprep.subr.mxu0 0.0
    %925 = vmatpush1.xpose.msra.mxu0 0.0
    %926 = vmatprep.subr.mxu0 0.0
    %927 = vmatpush1.xpose.msra.mxu0 0.0
    %928 = vmatprep.subr.mxu0 0.0
    %929 = vmatpush1.xpose.msra.mxu0 0.0
    %930 = vmatprep.subr.mxu0 0.0
    %931 = vmatpush1.xpose.msra.mxu0 0.0
    %932 = vmatprep.subr.mxu0 0.0
    %933 = vmatpush1.xpose.msra.mxu0 0.0
    %934 = vmatprep.subr.mxu0 0.0
    %935 = vmatpush1.xpose.msra.mxu0 0.0
    %936 = vmatprep.subr.mxu0 0.0
    %937 = vmatpush1.xpose.msra.mxu0 0.0
    %938 = vmatprep.subr.mxu0 0.0
    %939 = vmatpush1.xpose.msra.mxu0 0.0
    %940 = vmatprep.subr.mxu0 0.0
    %941 = vmatpush1.xpose.msra.mxu0 0.0
    %942 = vmatprep.subr.mxu0 0.0
    %943 = vmatpush1.xpose.msra.mxu0 0.0
    %944 = vmatprep.mubr.f32.mxu0 %v389
    %945 = vmatmul.mubr.f32.gmra.mrb[0].mxu0 %v388
    %v946 = vpop.f32.mrb[0].mxu0
    %v947 = vadd.f32 %v877, %v946
    %v948 = vpop.f32.mrb[0].mxu0
    %949 = vdwg.mxu0
    %v950 = vld [vmem:[%s3] sm:$0x7]
    %v951 = vld [vmem:[%s3 + $0x4] sm:$0x7]
    %v952 = vadd.f32 %v950, %v667
    %v953 = vadd.f32 %v951, %v947
    %vm954 = vcmask 18432
    %955 = vst.msk [vmem:[%s3] sm:$0x7] %vm954, %v952
    %956 = vst.msk [vmem:[%s3 + $0x4] sm:$0x7] %vm954, %v953
    // Predicated region
    $region30: #{tpu_custom_call.1} parent=1 // pred_check
      %p957 = pneg %p49
    $region31: #{tpu_custom_call.1} parent=1 // pred_check_branch
      %959 = sbr.rel (%p957) target = $region33
    $region32: #{tpu_custom_call.1} parent=1 // pred_region
      %v960 = vld [vmem:[%s3] sm:$0x7]
      %v961 = vld [vmem:[%s3 + $0x4] sm:$0x7]
      %v962 = vlaneseq
      %v963 = vshrl.u32 %v962, 7
      %v964 = vlaneseq
      %v965 = vand.u32 %v964, 127
      %vm966 = vcmp.eq.s32.totalorder %v963, %v965
      %v967 = vsel %vm966, 1, 0
      %v968 = vcvt.s32.f32 %v967
      %v969 = vmul.f32 %v960, %v968
      %v970 = vmul.f32 %v961, %v968
      %v971 = vsel %vm954, %v969, 0.0
      %972 = vadd.xlane.f32.xlu0 %v971
      %v973 = vpop.xlane.xlu0 %972
      %v974 = vsel %vm954, %v970, 0.0
      %975 = vadd.xlane.f32.xlu0 %v974
      %v976 = vpop.xlane.xlu0 %975
      %v977 = vrsqrt.pop %v973
      %v978 = vmul.f32 %v973, %v977
      %vm979 = vcmp.eq.f32.partialorder %v973, inf
      %v980 = vsel %vm979, %v973, %v978
      %vm981 = vcmp.eq.f32.partialorder %v973, 0.0
      %v982 = vand.u32 %v973, 2147483648
      %v983 = vsel %vm981, %v982, %v980
      %v984 = vrsqrt.pop %v976
      %v985 = vmul.f32 %v976, %v984
      %vm986 = vcmp.eq.f32.partialorder %v976, inf
      %v987 = vsel %vm986, %v976, %v985
      %vm988 = vcmp.eq.f32.partialorder %v976, 0.0
      %v989 = vand.u32 %v976, 2147483648
      %v990 = vsel %vm988, %v989, %v987
      %v991 = vmax.f32 %v983, 1e-08
      %v992 = vmax.f32 %v990, 1e-08
      %v995 = vlaneseq
      %v996 = vshrl.u32 %v995, 7
      %v997 = vsub.s32 %v965, %v996
      %v998 = vrot.slane %v991, %v997
      %v999 = vlaneseq
      %v1000 = vshrl.u32 %v999, 7
      %v1001 = vsub.s32 %v965, %v1000
      %v1002 = vrot.slane %v992, %v1001
      %vm1003 = vcmask 1042434
      %v1004 = vsel %vm1003, %v998, %v998
      %v1005 = vsel %vm1003, %v1002, %v1002
      %v1008 = vmul.f32 %v991, %v1004
      %v1009 = vmul.f32 %v992, %v1005
      %v1010 = vand.u32 2147483647, %v960
      %v1011 = vand.u32 2147483647, %v961
      %v1012 = vrcp.pop %v1008
      %v1013 = vmul.f32 %v1010, %v1012
      %v1014 = vrcp.pop %v1009
      %v1015 = vmul.f32 %v1011, %v1014
      %1016 = vst.msk [vmem:[%s3] sm:$0x7] %vm954, %v1013
      %1017 = vst.msk [vmem:[%s3 + $0x4] sm:$0x7] %vm954, %v1015
    $region33: #{tpu_custom_call.1} parent=1 // pred_fallthru
      _
    // Predicated region
    $region34: #{tpu_custom_call.1} parent=1 // pred_check
      _
    $region35: #{tpu_custom_call.1} parent=1 // pred_check_branch
      %1019 = sbr.rel (0) target = $region37
    $region36: #{tpu_custom_call.1} parent=1 // pred_region
      _
    $region37: #{tpu_custom_call.1} parent=1 // pred_fallthru
      _
    // Predicated region
    $region38: #{tpu_custom_call.1} parent=1 // pred_check
      _
    $region39: #{tpu_custom_call.1} parent=1 // pred_check_branch
      %1021 = sbr.rel (0) target = $region41
    $region40: #{tpu_custom_call.1} parent=1 // pred_region
      _
    $region41: #{tpu_custom_call.1} parent=1 // pred_fallthru
      _
    %1022 = vsyncpa [#allocation3], 1
    %1023 = vsyncpa [#allocation5], 1

</llo_original>
